<compile_context>
chip_gen: v7x
topology: tpu7x:2x2x1
jax: 0.10.0
libtpu: 0.0.40
codegen_flags: <defaults>
</compile_context>

<pallas_src>
import jax
import jax.numpy as jnp
from jax import lax
from jax.experimental import pallas as pl
from jax.experimental.pallas import tpu as pltpu


def _sum_pool_kernel(x_ref, p_ref, w_ref, b_ref, o_ref):
    # x_ref : (TB, kh*W)   TB rows, each one (n, c, output_row) slab of input
    # p_ref : (kh*W, Wo)   constant 0/1 pooling matrix (channel-agnostic)
    # w_ref : (TB, 1)      per-row (i.e. per-channel) weight
    # b_ref : (TB, 1)      per-row (i.e. per-channel) bias
    # o_ref : (TB, Wo)     pooled, scaled, shifted output rows
    pooled = jnp.dot(x_ref[...], p_ref[...], preferred_element_type=jnp.float32)
    o_ref[...] = pooled * w_ref[...] + b_ref[...]


def sum_pool2d(x, weight, bias, kernel_size):
    """weight * AvgPool2d(kernel_size, divisor_override=1)(x) + bias.

    x: (N, C, H, W); weight, bias: (1, C, 1, 1) per-channel affine params.
    """
    if isinstance(kernel_size, int):
        kh = kw = kernel_size
    else:
        kh, kw = kernel_size
    n, c, h, w = x.shape
    ho, wo = h // kh, w // kw            # AvgPool2d floor behaviour, no padding

    x = x.astype(jnp.float32)            # no-op if already f32
    if h % kh != 0:
        # Only the H direction needs a crop; the W remainder is handled by
        # all-zero columns in the pooling matrix (no copy needed for W).
        x = x[:, :, : ho * kh, :]

    r = n * c * ho                       # one row per (n, c, output_row)
    khw = kh * w
    # Pure contiguous reshape: (N, C, Ho*kh, W) -> (N*C*Ho, kh*W). No HBM copy.
    x2 = x.reshape(r, khw)

    # ---- tiny constant pooling matrix (kh*W, Wo), built once in the wrapper ----
    # P[i*W + ww, s] = 1 iff column ww falls in output window s (ww < Wo*kw).
    ww_idx = jnp.arange(w)
    p_w = ((ww_idx[:, None] // kw == jnp.arange(wo)[None, :])
           & (ww_idx[:, None] < wo * kw)).astype(jnp.float32)       # (W, Wo)
    p = jnp.tile(p_w, (kh, 1))                                      # (kh*W, Wo)

    # ---- per-row weight / bias (row order: n-major, then c, then output_row) ----
    w_rows = jnp.tile(jnp.repeat(weight.reshape(c).astype(jnp.float32), ho), n)
    b_rows = jnp.tile(jnp.repeat(bias.reshape(c).astype(jnp.float32), ho), n)
    w_rows = w_rows.reshape(r, 1)
    b_rows = b_rows.reshape(r, 1)

    # ---- row-block size: >=8 sublanes, grid >= 2 when possible (v7x 2 TCs) ----
    tb = min(256, r)
    if r >= 16:
        tb = min(tb, max(8, r // 2))
    tb = max(1, min(tb, r))
    if tb >= 8:
        tb = (tb // 8) * 8
    grid = (pl.cdiv(r, tb),)

    out2 = pl.pallas_call(
        _sum_pool_kernel,
        out_shape=jax.ShapeDtypeStruct((r, wo), jnp.float32),
        grid=grid,
        in_specs=[
            pl.BlockSpec((tb, khw), lambda b: (b, 0)),     # full rows -> contiguous DMA
            pl.BlockSpec((khw, wo), lambda b: (0, 0)),     # constant block, fetched once
            pl.BlockSpec((tb, 1), lambda b: (b, 0)),
            pl.BlockSpec((tb, 1), lambda b: (b, 0)),
        ],
        out_specs=pl.BlockSpec((tb, wo), lambda b: (b, 0)),
        compiler_params=pltpu.CompilerParams(
            dimension_semantics=("parallel",)),
    )(x2, p, w_rows, b_rows)

    # Pure reshape back to NCHW-pooled layout.
    return out2.reshape(n, c, ho, wo)


def reference(x, weight, bias, kernel_size):
    if isinstance(kernel_size, int):
        kh = kw = kernel_size
    else:
        kh, kw = kernel_size
    pooled = lax.reduce_window(x, 0.0, lax.add,
                               window_dimensions=(1, 1, kh, kw),
                               window_strides=(1, 1, kh, kw),
                               padding="VALID")
    return weight * pooled + bias


if __name__ == "__main__":
    key = jax.random.PRNGKey(0)
    N, C, H, W, K = 2, 4, 16, 16, 2

    key, xk, wk, bk = jax.random.split(key, 4)
    x = jax.random.normal(xk, (N, C, H, W), jnp.float32)
    weight = jax.random.uniform(wk, (1, C, 1, 1), jnp.float32)   # torch.rand-style init
    bias = jax.random.uniform(bk, (1, C, 1, 1), jnp.float32)

    fn = jax.jit(sum_pool2d, static_argnums=3)
    out = jax.block_until_ready(fn(x, weight, bias, K))

    ref = reference(x, weight, bias, K)
    assert out.shape == (N, C, H // K, W // K), out.shape
    assert jnp.allclose(out, ref, atol=1e-4, rtol=1e-4), \
        float(jnp.max(jnp.abs(out - ref)))
    print("KERNEL_OK")
</pallas_src>

<mosaic_0001>
module attributes {stable_mosaic.version = 11 : i64} {
  func.func @_sum_pool_kernel(%arg0: i32, %arg1: memref<32x32xf32, #tpu.memory_space<vmem>>, %arg2: memref<32x8xf32, #tpu.memory_space<vmem>>, %arg3: memref<32x1xf32, #tpu.memory_space<vmem>>, %arg4: memref<32x1xf32, #tpu.memory_space<vmem>>, %arg5: memref<32x8xf32, #tpu.memory_space<vmem>>) attributes {dimension_semantics = [#tpu.dimension_semantics<parallel>], iteration_bounds = array<i64: 2>, scalar_prefetch = 0 : i64, scratch_operands = 0 : i64, tpu.core_type = #tpu.core_type<tc>, window_params = [{transform_indices = @transform_0, window_bounds = array<i64: 32, 32>}, {pipeline_mode = #tpu.pipeline_mode<synchronous>, transform_indices = @transform_1, window_bounds = array<i64: 32, 8>}, {transform_indices = @transform_2, window_bounds = array<i64: 32, 1>}, {transform_indices = @transform_3, window_bounds = array<i64: 32, 1>}, {transform_indices = @transform_4, window_bounds = array<i64: 32, 8>}]} {
    %c0 = arith.constant 0 : index
    %c0_0 = arith.constant 0 : index
    %0 = vector.load %arg1[%c0, %c0_0] : memref<32x32xf32, #tpu.memory_space<vmem>>, vector<32x32xf32>
    %c0_1 = arith.constant 0 : index
    %c0_2 = arith.constant 0 : index
    %1 = vector.load %arg2[%c0_1, %c0_2] : memref<32x8xf32, #tpu.memory_space<vmem>>, vector<32x8xf32>
    %cst = arith.constant dense<0.000000e+00> : vector<32x8xf32>
    %2 = tpu.matmul %0, %1, %cst {dimension_numbers = #tpu.dot_dimension_numbers<[1], [0], [0], [1], [0, 0, 1, 1], [], []>} : vector<32x32xf32>, vector<32x8xf32>, vector<32x8xf32> -> vector<32x8xf32>
    %c0_3 = arith.constant 0 : index
    %c0_4 = arith.constant 0 : index
    %3 = vector.load %arg3[%c0_3, %c0_4] : memref<32x1xf32, #tpu.memory_space<vmem>>, vector<32x1xf32>
    %4 = vector.broadcast %3 : vector<32x1xf32> to vector<32x8xf32>
    %5 = arith.mulf %2, %4 : vector<32x8xf32>
    %c0_5 = arith.constant 0 : index
    %c0_6 = arith.constant 0 : index
    %6 = vector.load %arg4[%c0_5, %c0_6] : memref<32x1xf32, #tpu.memory_space<vmem>>, vector<32x1xf32>
    %7 = vector.broadcast %6 : vector<32x1xf32> to vector<32x8xf32>
    %8 = arith.addf %5, %7 : vector<32x8xf32>
    %c0_7 = arith.constant 0 : index
    %c0_8 = arith.constant 0 : index
    %9 = vector.load %arg5[%c0_7, %c0_8] : memref<32x8xf32, #tpu.memory_space<vmem>>, vector<32x8xf32>
    tpu.vector_store %arg5[%c0_7, %c0_8], %8 {strides = array<i32>} : memref<32x8xf32, #tpu.memory_space<vmem>>, vector<32x8xf32>,
    return
  }
  func.func @transform_0(%arg0: i32) -> (i32, i32) {
    %c0_i32 = arith.constant 0 : i32
    %c0_i32_0 = arith.constant 0 : i32
    return %arg0, %c0_i32 : i32, i32
  }
  func.func @transform_1(%arg0: i32) -> (i32, i32) {
    %c0_i32 = arith.constant 0 : i32
    %c0_i32_0 = arith.constant 0 : i32
    %c0_i32_1 = arith.constant 0 : i32
    return %c0_i32, %c0_i32_0 : i32, i32
  }
  func.func @transform_2(%arg0: i32) -> (i32, i32) {
    %c0_i32 = arith.constant 0 : i32
    %c0_i32_0 = arith.constant 0 : i32
    return %arg0, %c0_i32 : i32, i32
  }
  func.func @transform_3(%arg0: i32) -> (i32, i32) {
    %c0_i32 = arith.constant 0 : i32
    %c0_i32_0 = arith.constant 0 : i32
    return %arg0, %c0_i32 : i32, i32
  }
  func.func @transform_4(%arg0: i32) -> (i32, i32) {
    %c0_i32 = arith.constant 0 : i32
    %c0_i32_0 = arith.constant 0 : i32
    return %arg0, %c0_i32 : i32, i32
  }
}

</mosaic_0001>

<llo_original>
// kernel: tile.19
$region0: #{tile.19}
  %s0 = inlined_call_operand.vmem [shape: f32[4,8], index: 0, kind: input, shape index: {}]
  %s1 = inlined_call_operand.vmem [shape: f32[32], index: 1, kind: output, shape index: {}]
  $region1: #{tile.19} parent=0
    #allocation0 [shape = 'u8[4096]{0}', space=vmem, size = 0x1000, scoped, tag = 'scoped mem for output reshape']
    #allocation1 [shape = 'u8[4096]{0}', space=vmem, size = 0x1000, scoped, tag = 'scoped mem for input reshape']
    %s3 = sshllo.u32 0, 4
    %v4 = vld [vmem:[%s0] sm:%s3]
    %5 = vst [vmem:[#allocation1] sm:%s3] %v4
    %v6 = vld [vmem:[#allocation1] sm:$0x1]
    %vm7 = vcmask 64512
    %8 = vst.msk [vmem:[#allocation0] sm:$0x1] %vm7, %v6
    %s9 = scalar_lea.vmem [#allocation1], 3
    %v10 = vld [vmem:[%s9] sm:$0x1]
    %11 = vrot.lane.b32.xlu0 %v10, 24
    %v12 = vpop.permute.xlu0 %11
    %vm13 = vcmask 261312
    %14 = vst.msk [vmem:[#allocation0] sm:$0x1] %vm13, %v12
    %s15 = scalar_lea.vmem [#allocation1], 2
    %v16 = vld [vmem:[%s15] sm:$0x1]
    %17 = vrot.lane.b32.xlu0 %v16, 16
    %v18 = vpop.permute.xlu0 %17
    %vm19 = vcmask 195712
    %20 = vst.msk [vmem:[#allocation0] sm:$0x1] %vm19, %v18
    %s21 = scalar_lea.vmem [#allocation1], 1
    %v22 = vld [vmem:[%s21] sm:$0x1]
    %23 = vrot.lane.b32.xlu0 %v22, 8
    %v24 = vpop.permute.xlu0 %23
    %vm25 = vcmask 130112
    %26 = vst.msk [vmem:[#allocation0] sm:$0x1] %vm25, %v24
    %s28 = sshllo.u32 0, 1
    %v30 = vld [vmem:[#allocation0] sm:%s28]
    %s31 = sshllo.u32 0, 1
    %32 = vst [vmem:[%s1] sm:%s31] %v30

// kernel: tile.20
$region0: #{tile.20}
  #allocation0 [shape = 's32[1]{0}', space=sflag, size = 0x4, scoped, tag = 'scoped memory for tile.20']
  %s0 = inlined_call_operand.vmem [shape: f32[32], index: 0, kind: input, shape index: {}]
  %s1 = inlined_call_operand.vmem [shape: f32[2,32], index: 1, kind: output, shape index: {}]
  // Predicated region
  $region2: #{tile.20} parent=0 // pred_check
    _
  $region3: #{tile.20} parent=0 // pred_check_branch
    %3 = sbr.rel (0) target = $region5
  $region4: #{tile.20} parent=0 // pred_region
    _
  $region5: #{tile.20} parent=0 // pred_fallthru
    _
  %v4 = vld [vmem:[%s0] ss:$0 sm:$0xff]
  %5 = vst [vmem:[%s1] sm:$0x3] %v4

// kernel: tile.1
$region0: #{tile.1}
  %s0 = inlined_call_operand.vmem [shape: f32[2,32], index: 0, kind: input, shape index: {}]
  %s1 = inlined_call_operand.vmem [shape: f32[64,1], index: 1, kind: output, shape index: {}]
  $region1: #{tile.1} parent=0
    #allocation0 [shape = 'u8[4096]{0}', space=vmem, size = 0x1000, scoped, tag = 'scoped mem for input reshape']
    %s3 = sshllo.u32 0, 2
    %v4 = vld [vmem:[%s0] sm:%s3]
    %5 = vst [vmem:[#allocation0] sm:%s3] %v4
    %v6 = vld [vmem:[#allocation0] sm:$0x3]
    %vm7 = vcmask 7168
    %8 = vst.msk [vmem:[%s1] sm:$0x1] %vm7, %v6
    %s9 = scalar_lea.vmem %s1, 31
    %10 = vst.msk [vmem:[%s9] sm:$0x2] %vm7, %v6
    %v11 = vld [vmem:[#allocation0] sm:$0x3]
    %12 = vrot.lane.b32.xlu0 %v11, 127
    %v13 = vpop.permute.xlu0 %12
    %vm14 = vcmask 7168
    %s15 = scalar_lea.vmem %s1, 1
    %16 = vst.msk [vmem:[%s15] sm:$0x1] %vm14, %v13
    %s17 = scalar_lea.vmem %s1, 32
    %18 = vst.msk [vmem:[%s17] sm:$0x2] %vm14, %v13
    %v19 = vld [vmem:[#allocation0] sm:$0x3]
    %20 = vrot.lane.b32.xlu0 %v19, 126
    %v21 = vpop.permute.xlu0 %20
    %vm22 = vcmask 7168
    %s23 = scalar_lea.vmem %s1, 2
    %24 = vst.msk [vmem:[%s23] sm:$0x1] %vm22, %v21
    %s25 = scalar_lea.vmem %s1, 33
    %26 = vst.msk [vmem:[%s25] sm:$0x2] %vm22, %v21
    %v27 = vld [vmem:[#allocation0] sm:$0x3]
    %28 = vrot.lane.b32.xlu0 %v27, 125
    %v29 = vpop.permute.xlu0 %28
    %vm30 = vcmask 7168
    %s31 = scalar_lea.vmem %s1, 3
    %32 = vst.msk [vmem:[%s31] sm:$0x1] %vm30, %v29
    %s33 = scalar_lea.vmem %s1, 34
    %34 = vst.msk [vmem:[%s33] sm:$0x2] %vm30, %v29
    %v35 = vld [vmem:[#allocation0] sm:$0x3]
    %36 = vrot.lane.b32.xlu0 %v35, 124
    %v37 = vpop.permute.xlu0 %36
    %vm38 = vcmask 7168
    %s39 = scalar_lea.vmem %s1, 4
    %40 = vst.msk [vmem:[%s39] sm:$0x1] %vm38, %v37
    %s41 = scalar_lea.vmem %s1, 35
    %42 = vst.msk [vmem:[%s41] sm:$0x2] %vm38, %v37
    %v43 = vld [vmem:[#allocation0] sm:$0x3]
    %44 = vrot.lane.b32.xlu0 %v43, 123
    %v45 = vpop.permute.xlu0 %44
    %vm46 = vcmask 7168
    %s47 = scalar_lea.vmem %s1, 5
    %48 = vst.msk [vmem:[%s47] sm:$0x1] %vm46, %v45
    %s49 = scalar_lea.vmem %s1, 36
    %50 = vst.msk [vmem:[%s49] sm:$0x2] %vm46, %v45
    %v51 = vld [vmem:[#allocation0] sm:$0x3]
    %52 = vrot.lane.b32.xlu0 %v51, 122
    %v53 = vpop.permute.xlu0 %52
    %vm54 = vcmask 7168
    %s55 = scalar_lea.vmem %s1, 6
    %56 = vst.msk [vmem:[%s55] sm:$0x1] %vm54, %v53
    %s57 = scalar_lea.vmem %s1, 37
    %58 = vst.msk [vmem:[%s57] sm:$0x2] %vm54, %v53
    %v59 = vld [vmem:[#allocation0] sm:$0x3]
    %60 = vrot.lane.b32.xlu0 %v59, 121
    %v61 = vpop.permute.xlu0 %60
    %vm62 = vcmask 7168
    %s63 = scalar_lea.vmem %s1, 7
    %64 = vst.msk [vmem:[%s63] sm:$0x1] %vm62, %v61
    %s65 = scalar_lea.vmem %s1, 38
    %66 = vst.msk [vmem:[%s65] sm:$0x2] %vm62, %v61
    %v67 = vld [vmem:[#allocation0] sm:$0x3]
    %68 = vrot.lane.b32.xlu0 %v67, 120
    %v69 = vpop.permute.xlu0 %68
    %vm70 = vcmask 7168
    %s71 = scalar_lea.vmem %s1, 8
    %72 = vst.msk [vmem:[%s71] sm:$0x1] %vm70, %v69
    %s73 = scalar_lea.vmem %s1, 39
    %74 = vst.msk [vmem:[%s73] sm:$0x2] %vm70, %v69
    %v75 = vld [vmem:[#allocation0] sm:$0x3]
    %76 = vrot.lane.b32.xlu0 %v75, 119
    %v77 = vpop.permute.xlu0 %76
    %vm78 = vcmask 7168
    %s79 = scalar_lea.vmem %s1, 9
    %80 = vst.msk [vmem:[%s79] sm:$0x1] %vm78, %v77
    %s81 = scalar_lea.vmem %s1, 40
    %82 = vst.msk [vmem:[%s81] sm:$0x2] %vm78, %v77
    %v83 = vld [vmem:[#allocation0] sm:$0x3]
    %84 = vrot.lane.b32.xlu0 %v83, 118
    %v85 = vpop.permute.xlu0 %84
    %vm86 = vcmask 7168
    %s87 = scalar_lea.vmem %s1, 10
    %88 = vst.msk [vmem:[%s87] sm:$0x1] %vm86, %v85
    %s89 = scalar_lea.vmem %s1, 41
    %90 = vst.msk [vmem:[%s89] sm:$0x2] %vm86, %v85
    %v91 = vld [vmem:[#allocation0] sm:$0x3]
    %92 = vrot.lane.b32.xlu0 %v91, 117
    %v93 = vpop.permute.xlu0 %92
    %vm94 = vcmask 7168
    %s95 = scalar_lea.vmem %s1, 11
    %96 = vst.msk [vmem:[%s95] sm:$0x1] %vm94, %v93
    %s97 = scalar_lea.vmem %s1, 42
    %98 = vst.msk [vmem:[%s97] sm:$0x2] %vm94, %v93
    %v99 = vld [vmem:[#allocation0] sm:$0x3]
    %100 = vrot.lane.b32.xlu0 %v99, 116
    %v101 = vpop.permute.xlu0 %100
    %vm102 = vcmask 7168
    %s103 = scalar_lea.vmem %s1, 12
    %104 = vst.msk [vmem:[%s103] sm:$0x1] %vm102, %v101
    %s105 = scalar_lea.vmem %s1, 43
    %106 = vst.msk [vmem:[%s105] sm:$0x2] %vm102, %v101
    %v107 = vld [vmem:[#allocation0] sm:$0x3]
    %108 = vrot.lane.b32.xlu0 %v107, 115
    %v109 = vpop.permute.xlu0 %108
    %vm110 = vcmask 7168
    %s111 = scalar_lea.vmem %s1, 13
    %112 = vst.msk [vmem:[%s111] sm:$0x1] %vm110, %v109
    %s113 = scalar_lea.vmem %s1, 44
    %114 = vst.msk [vmem:[%s113] sm:$0x2] %vm110, %v109
    %v115 = vld [vmem:[#allocation0] sm:$0x3]
    %116 = vrot.lane.b32.xlu0 %v115, 114
    %v117 = vpop.permute.xlu0 %116
    %vm118 = vcmask 7168
    %s119 = scalar_lea.vmem %s1, 14
    %120 = vst.msk [vmem:[%s119] sm:$0x1] %vm118, %v117
    %s121 = scalar_lea.vmem %s1, 45
    %122 = vst.msk [vmem:[%s121] sm:$0x2] %vm118, %v117
    %v123 = vld [vmem:[#allocation0] sm:$0x3]
    %124 = vrot.lane.b32.xlu0 %v123, 113
    %v125 = vpop.permute.xlu0 %124
    %vm126 = vcmask 7168
    %s127 = scalar_lea.vmem %s1, 15
    %128 = vst.msk [vmem:[%s127] sm:$0x1] %vm126, %v125
    %s129 = scalar_lea.vmem %s1, 46
    %130 = vst.msk [vmem:[%s129] sm:$0x2] %vm126, %v125
    %v131 = vld [vmem:[#allocation0] sm:$0x3]
    %132 = vrot.lane.b32.xlu0 %v131, 112
    %v133 = vpop.permute.xlu0 %132
    %vm134 = vcmask 7168
    %s135 = scalar_lea.vmem %s1, 16
    %136 = vst.msk [vmem:[%s135] sm:$0x1] %vm134, %v133
    %s137 = scalar_lea.vmem %s1, 47
    %138 = vst.msk [vmem:[%s137] sm:$0x2] %vm134, %v133
    %v139 = vld [vmem:[#allocation0] sm:$0x3]
    %140 = vrot.lane.b32.xlu0 %v139, 111
    %v141 = vpop.permute.xlu0 %140
    %vm142 = vcmask 7168
    %s143 = scalar_lea.vmem %s1, 17
    %144 = vst.msk [vmem:[%s143] sm:$0x1] %vm142, %v141
    %s145 = scalar_lea.vmem %s1, 48
    %146 = vst.msk [vmem:[%s145] sm:$0x2] %vm142, %v141
    %v147 = vld [vmem:[#allocation0] sm:$0x3]
    %148 = vrot.lane.b32.xlu0 %v147, 110
    %v149 = vpop.permute.xlu0 %148
    %vm150 = vcmask 7168
    %s151 = scalar_lea.vmem %s1, 18
    %152 = vst.msk [vmem:[%s151] sm:$0x1] %vm150, %v149
    %s153 = scalar_lea.vmem %s1, 49
    %154 = vst.msk [vmem:[%s153] sm:$0x2] %vm150, %v149
    %v155 = vld [vmem:[#allocation0] sm:$0x3]
    %156 = vrot.lane.b32.xlu0 %v155, 109
    %v157 = vpop.permute.xlu0 %156
    %vm158 = vcmask 7168
    %s159 = scalar_lea.vmem %s1, 19
    %160 = vst.msk [vmem:[%s159] sm:$0x1] %vm158, %v157
    %s161 = scalar_lea.vmem %s1, 50
    %162 = vst.msk [vmem:[%s161] sm:$0x2] %vm158, %v157
    %v163 = vld [vmem:[#allocation0] sm:$0x3]
    %164 = vrot.lane.b32.xlu0 %v163, 108
    %v165 = vpop.permute.xlu0 %164
    %vm166 = vcmask 7168
    %s167 = scalar_lea.vmem %s1, 20
    %168 = vst.msk [vmem:[%s167] sm:$0x1] %vm166, %v165
    %s169 = scalar_lea.vmem %s1, 51
    %170 = vst.msk [vmem:[%s169] sm:$0x2] %vm166, %v165
    %v171 = vld [vmem:[#allocation0] sm:$0x3]
    %172 = vrot.lane.b32.xlu0 %v171, 107
    %v173 = vpop.permute.xlu0 %172
    %vm174 = vcmask 7168
    %s175 = scalar_lea.vmem %s1, 21
    %176 = vst.msk [vmem:[%s175] sm:$0x1] %vm174, %v173
    %s177 = scalar_lea.vmem %s1, 52
    %178 = vst.msk [vmem:[%s177] sm:$0x2] %vm174, %v173
    %v179 = vld [vmem:[#allocation0] sm:$0x3]
    %180 = vrot.lane.b32.xlu0 %v179, 106
    %v181 = vpop.permute.xlu0 %180
    %vm182 = vcmask 7168
    %s183 = scalar_lea.vmem %s1, 22
    %184 = vst.msk [vmem:[%s183] sm:$0x1] %vm182, %v181
    %s185 = scalar_lea.vmem %s1, 53
    %186 = vst.msk [vmem:[%s185] sm:$0x2] %vm182, %v181
    %v187 = vld [vmem:[#allocation0] sm:$0x3]
    %188 = vrot.lane.b32.xlu0 %v187, 105
    %v189 = vpop.permute.xlu0 %188
    %vm190 = vcmask 7168
    %s191 = scalar_lea.vmem %s1, 23
    %192 = vst.msk [vmem:[%s191] sm:$0x1] %vm190, %v189
    %s193 = scalar_lea.vmem %s1, 54
    %194 = vst.msk [vmem:[%s193] sm:$0x2] %vm190, %v189
    %v195 = vld [vmem:[#allocation0] sm:$0x3]
    %196 = vrot.lane.b32.xlu0 %v195, 104
    %v197 = vpop.permute.xlu0 %196
    %vm198 = vcmask 7168
    %s199 = scalar_lea.vmem %s1, 24
    %200 = vst.msk [vmem:[%s199] sm:$0x1] %vm198, %v197
    %s201 = scalar_lea.vmem %s1, 55
    %202 = vst.msk [vmem:[%s201] sm:$0x2] %vm198, %v197
    %v203 = vld [vmem:[#allocation0] sm:$0x3]
    %204 = vrot.lane.b32.xlu0 %v203, 103
    %v205 = vpop.permute.xlu0 %204
    %vm206 = vcmask 7168
    %s207 = scalar_lea.vmem %s1, 25
    %208 = vst.msk [vmem:[%s207] sm:$0x1] %vm206, %v205
    %s209 = scalar_lea.vmem %s1, 56
    %210 = vst.msk [vmem:[%s209] sm:$0x2] %vm206, %v205
    %v211 = vld [vmem:[#allocation0] sm:$0x3]
    %212 = vrot.lane.b32.xlu0 %v211, 102
    %v213 = vpop.permute.xlu0 %212
    %vm214 = vcmask 7168
    %s215 = scalar_lea.vmem %s1, 26
    %216 = vst.msk [vmem:[%s215] sm:$0x1] %vm214, %v213
    %s217 = scalar_lea.vmem %s1, 57
    %218 = vst.msk [vmem:[%s217] sm:$0x2] %vm214, %v213
    %v219 = vld [vmem:[#allocation0] sm:$0x3]
    %220 = vrot.lane.b32.xlu0 %v219, 101
    %v221 = vpop.permute.xlu0 %220
    %vm222 = vcmask 7168
    %s223 = scalar_lea.vmem %s1, 27
    %224 = vst.msk [vmem:[%s223] sm:$0x1] %vm222, %v221
    %s225 = scalar_lea.vmem %s1, 58
    %226 = vst.msk [vmem:[%s225] sm:$0x2] %vm222, %v221
    %v227 = vld [vmem:[#allocation0] sm:$0x3]
    %228 = vrot.lane.b32.xlu0 %v227, 100
    %v229 = vpop.permute.xlu0 %228
    %vm230 = vcmask 7168
    %s231 = scalar_lea.vmem %s1, 28
    %232 = vst.msk [vmem:[%s231] sm:$0x1] %vm230, %v229
    %s233 = scalar_lea.vmem %s1, 59
    %234 = vst.msk [vmem:[%s233] sm:$0x2] %vm230, %v229
    %v235 = vld [vmem:[#allocation0] sm:$0x3]
    %236 = vrot.lane.b32.xlu0 %v235, 99
    %v237 = vpop.permute.xlu0 %236
    %vm238 = vcmask 7168
    %s239 = scalar_lea.vmem %s1, 29
    %240 = vst.msk [vmem:[%s239] sm:$0x1] %vm238, %v237
    %s241 = scalar_lea.vmem %s1, 60
    %242 = vst.msk [vmem:[%s241] sm:$0x2] %vm238, %v237
    %v243 = vld [vmem:[#allocation0] sm:$0x3]
    %244 = vrot.lane.b32.xlu0 %v243, 98
    %v245 = vpop.permute.xlu0 %244
    %vm246 = vcmask 7168
    %s247 = scalar_lea.vmem %s1, 30
    %248 = vst.msk [vmem:[%s247] sm:$0x1] %vm246, %v245
    %s249 = scalar_lea.vmem %s1, 61
    %250 = vst.msk [vmem:[%s249] sm:$0x2] %vm246, %v245
    %v251 = vld [vmem:[#allocation0] sm:$0x3]
    %252 = vrot.lane.b32.xlu0 %v251, 97
    %v253 = vpop.permute.xlu0 %252
    %vm254 = vcmask 7168
    %s255 = scalar_lea.vmem %s1, 31
    %256 = vst.msk [vmem:[%s255] sm:$0x1] %vm254, %v253
    %s257 = scalar_lea.vmem %s1, 62
    %258 = vst.msk [vmem:[%s257] sm:$0x2] %vm254, %v253

// kernel: sum_pool2d.1
$region0: #{sum_pool2d.1}
  #allocation0 [shape = 'u32[]', space=smem, size = 0x4, offset = 0x4, fixed_abs, tag = 'smem constant byte address 0x4 - core index']
  #allocation1 [shape = 'u32[144,128]{1,0:T(1,128)}', space=vmem, size = 0x12000, scoped, tag = 'internal scratch']
  %s0 = inlined_call_operand.vmem [shape: f32[64,32], index: 0, kind: input, shape index: {}]
  %s1 = inlined_call_operand.vmem [shape: f32[32,8], index: 1, kind: input, shape index: {}]
  %s2 = inlined_call_operand.vmem [shape: f32[64,1], index: 2, kind: input, shape index: {}]
  %s3 = inlined_call_operand.vmem [shape: f32[64,1], index: 3, kind: input, shape index: {}]
  %s4 = inlined_call_operand.hbm [shape: f32[64,8], index: 4, kind: output, shape index: {}]
  %s5 = sld [smem:[#allocation0]]
  $region49: #{sum_pool2d.1} parent=0
    _
  %s7 = ssub.s32 1, %s5
  %s8 = scalar_select 0, %s7, %s5
  $region1: #{sum_pool2d.1} parent=0
    #allocation2 [shape = 'u8[32768]{0}', space=vmem, size = 0x8000, scoped, tag = 'output window, operand 0']
    #allocation3 [shape = 's32[2]{0}', space=sflag, size = 0x8, scoped, tag = 'scoped memory for sum_pool2d.1']
    %9 = vsyncpa [#allocation3], 0
    %s10 = scalar_lea.sflag [#allocation3], 1
    %11 = vsyncpa %s10, 0
    loop: start=0, step=1, limit=4
    $region2: #{sum_pool2d.1} parent=1 // loop_pre_header
      _
    $region3: #{sum_pool2d.1} parent=1 // loop_header
      %s13 = sphi 0, %s17
      %p14 = scmp.ge.s32.totalorder %s13, 4
      %s23 = sphi 0, %s25
      %s26 = sphi 0, %s23
      %s27 = sphi 0, %s26
      %s43 = sphi 0, %s27
      %s47 = sphi 0, %s47
      %s49 = sphi 0, %s47
      %s50 = sphi 0, %s49
      %s64 = sphi 0, %s50
      %s70 = sphi 0, %s72
      %s73 = sphi 0, %s70
      %s74 = sphi 0, %s73
      %s90 = sphi 0, %s74
      %s96 = sphi 0, %s98
      %s99 = sphi 0, %s96
      %s100 = sphi 0, %s99
      %s116 = sphi 0, %s100
      %s122 = sphi 0, %s124
      %s125 = sphi 0, %s122
      %s126 = sphi 0, %s125
      %s142 = sphi 0, %s126
    $region4: #{sum_pool2d.1} parent=1 // loop_header_branch
      %16 = sbr.rel (%p14) target = $region8
    $region5: #{sum_pool2d.1} parent=1 // loop_body
      %s18 = ssub.s32 %s13, 1
      %s19 = ssub.s32 %s13, 2
      %s20 = sadd.s32 %s13, 1
      %s21 = ssub.s32 %s13, %s20
      %p22 = scmp.eq.s32.totalorder %s21, 0
      %s24 = sadd.s32 %s23, 1
      %s25 = scalar_select %p22, %s23, %s24
      %p28 = pneg %p22
      %p29 = scmp.eq.s32.totalorder %s13, 1
      %p30 = por %p28, %p29
      %p31 = scmp.ne.s32.totalorder %s23, %s26
      %p32 = scmp.eq.s32.totalorder %s13, 0
      %p33 = por %p31, %p32
      %p34 = scmp.ne.s32.totalorder %s23, %s26
      %p35 = scmp.eq.s32.totalorder %s18, 1
      %p36 = por %p34, %p35
      %p37 = scmp.ne.s32.totalorder %s26, %s27
      %p38 = scmp.eq.s32.totalorder %s18, 0
      %p39 = por %p37, %p38
      %p40 = scmp.ne.s32.totalorder %s26, %s27
      %p41 = scmp.eq.s32.totalorder %s19, 1
      %p42 = por %p40, %p41
      %p44 = scmp.ne.s32.totalorder %s27, %s43
      %p45 = scmp.eq.s32.totalorder %s19, 0
      %p46 = por %p44, %p45
      %s48 = sadd.s32 %s47, 1
      %p51 = scmp.eq.s32.totalorder %s13, 1
      %p52 = scmp.ne.s32.totalorder %s47, %s49
      %p53 = scmp.eq.s32.totalorder %s13, 0
      %p54 = por %p52, %p53
      %p55 = scmp.ne.s32.totalorder %s47, %s49
      %p56 = scmp.eq.s32.totalorder %s18, 1
      %p57 = por %p55, %p56
      %p58 = scmp.ne.s32.totalorder %s49, %s50
      %p59 = scmp.eq.s32.totalorder %s18, 0
      %p60 = por %p58, %p59
      %p61 = scmp.ne.s32.totalorder %s49, %s50
      %p62 = scmp.eq.s32.totalorder %s19, 1
      %p63 = por %p61, %p62
      %p65 = scmp.ne.s32.totalorder %s50, %s64
      %p66 = scmp.eq.s32.totalorder %s19, 0
      %p67 = por %p65, %p66
      %s68 = ssub.s32 %s13, %s20
      %p69 = scmp.eq.s32.totalorder %s68, 0
      %s71 = sadd.s32 %s70, 1
      %s72 = scalar_select %p69, %s70, %s71
      %p75 = pneg %p69
      %p76 = scmp.eq.s32.totalorder %s13, 1
      %p77 = por %p75, %p76
      %p78 = scmp.ne.s32.totalorder %s70, %s73
      %p79 = scmp.eq.s32.totalorder %s13, 0
      %p80 = por %p78, %p79
      %p81 = scmp.ne.s32.totalorder %s70, %s73
      %p82 = scmp.eq.s32.totalorder %s18, 1
      %p83 = por %p81, %p82
      %p84 = scmp.ne.s32.totalorder %s73, %s74
      %p85 = scmp.eq.s32.totalorder %s18, 0
      %p86 = por %p84, %p85
      %p87 = scmp.ne.s32.totalorder %s73, %s74
      %p88 = scmp.eq.s32.totalorder %s19, 1
      %p89 = por %p87, %p88
      %p91 = scmp.ne.s32.totalorder %s74, %s90
      %p92 = scmp.eq.s32.totalorder %s19, 0
      %p93 = por %p91, %p92
      %s94 = ssub.s32 %s13, %s20
      %p95 = scmp.eq.s32.totalorder %s94, 0
      %s97 = sadd.s32 %s96, 1
      %s98 = scalar_select %p95, %s96, %s97
      %p101 = pneg %p95
      %p102 = scmp.eq.s32.totalorder %s13, 1
      %p103 = por %p101, %p102
      %p104 = scmp.ne.s32.totalorder %s96, %s99
      %p105 = scmp.eq.s32.totalorder %s13, 0
      %p106 = por %p104, %p105
      %p107 = scmp.ne.s32.totalorder %s96, %s99
      %p108 = scmp.eq.s32.totalorder %s18, 1
      %p109 = por %p107, %p108
      %p110 = scmp.ne.s32.totalorder %s99, %s100
      %p111 = scmp.eq.s32.totalorder %s18, 0
      %p112 = por %p110, %p111
      %p113 = scmp.ne.s32.totalorder %s99, %s100
      %p114 = scmp.eq.s32.totalorder %s19, 1
      %p115 = por %p113, %p114
      %p117 = scmp.ne.s32.totalorder %s100, %s116
      %p118 = scmp.eq.s32.totalorder %s19, 0
      %p119 = por %p117, %p118
      %s120 = ssub.s32 %s13, %s20
      %p121 = scmp.eq.s32.totalorder %s120, 0
      %s123 = sadd.s32 %s122, 1
      %s124 = scalar_select %p121, %s122, %s123
      %p127 = pneg %p121
      %p128 = scmp.eq.s32.totalorder %s13, 1
      %p129 = por %p127, %p128
      %p130 = scmp.ne.s32.totalorder %s122, %s125
      %p131 = scmp.eq.s32.totalorder %s13, 0
      %p132 = por %p130, %p131
      %p133 = scmp.ne.s32.totalorder %s122, %s125
      %p134 = scmp.eq.s32.totalorder %s18, 1
      %p135 = por %p133, %p134
      %p136 = scmp.ne.s32.totalorder %s125, %s126
      %p137 = scmp.eq.s32.totalorder %s18, 0
      %p138 = por %p136, %p137
      %p139 = scmp.ne.s32.totalorder %s125, %s126
      %p140 = scmp.eq.s32.totalorder %s19, 1
      %p141 = por %p139, %p140
      %p143 = scmp.ne.s32.totalorder %s126, %s142
      %p144 = scmp.eq.s32.totalorder %s19, 0
      %p145 = por %p143, %p144
      %p146 = scmp.le.s32.totalorder 1, %s13
      %p147 = scmp.lt.s32.totalorder %s13, 3
      %p148 = pnand %p146, %p147
      %p149 = pneg %p148
      // Predicated region
      $region9: #{sum_pool2d.1} parent=5 // pred_check
        _
      $region10: #{sum_pool2d.1} parent=5 // pred_check_branch
        %151 = sbr.rel (%p148) target = $region12
      $region11: #{sum_pool2d.1} parent=5 // pred_region
        %s152 = ssub.s32 %s13, 1
        // Predicated region
        $region13: #{sum_pool2d.1} parent=11 // pred_check
          %p153 = pneg %p60
        $region14: #{sum_pool2d.1} parent=11 // pred_check_branch
          %155 = sbr.rel (%p153) target = $region16
        $region15: #{sum_pool2d.1} parent=11 // pred_region
          _
        $region16: #{sum_pool2d.1} parent=11 // pred_fallthru
          _
      $region12: #{sum_pool2d.1} parent=5 // pred_fallthru
        _
      %p156 = scmp.lt.s32.totalorder %s13, 2
      // Predicated region
      $region17: #{sum_pool2d.1} parent=5 // pred_check
        %p157 = pneg %p156
      $region18: #{sum_pool2d.1} parent=5 // pred_check_branch
        %159 = sbr.rel (%p157) target = $region20
      $region19: #{sum_pool2d.1} parent=5 // pred_region
        // Predicated region
        $region21: #{sum_pool2d.1} parent=19 // pred_check
          %p160 = pneg %p33
        $region22: #{sum_pool2d.1} parent=19 // pred_check_branch
          %162 = sbr.rel (%p160) target = $region24
        $region23: #{sum_pool2d.1} parent=19 // pred_region
          %s163 = smul.u32 4, %s13
          %p164 = scmp.lt.s32.totalorder %s163, 7
          %s165 = scalar_select %p164, %s163, 7
          %s166 = smul.addr %s165, 8
          %s167 = scalar_lea.vmem %s0, %s166
          %s168 = smul.u32 4, %s13
        $region24: #{sum_pool2d.1} parent=19 // pred_fallthru
          _
        // Predicated region
        $region25: #{sum_pool2d.1} parent=19 // pred_check
          %p169 = pneg %p80
        $region26: #{sum_pool2d.1} parent=19 // pred_check_branch
          %171 = sbr.rel (%p169) target = $region28
        $region27: #{sum_pool2d.1} parent=19 // pred_region
          %s172 = smul.u32 4, %s13
          %p173 = scmp.lt.s32.totalorder %s172, 7
          %s174 = scalar_select %p173, %s172, 7
          %s175 = smul.addr %s174, 8
          %s176 = scalar_lea.vmem %s2, %s175
          %s177 = smul.u32 4, %s13
        $region28: #{sum_pool2d.1} parent=19 // pred_fallthru
          _
        // Predicated region
        $region29: #{sum_pool2d.1} parent=19 // pred_check
          %p178 = pneg %p106
        $region30: #{sum_pool2d.1} parent=19 // pred_check_branch
          %180 = sbr.rel (%p178) target = $region32
        $region31: #{sum_pool2d.1} parent=19 // pred_region
          %s181 = smul.u32 4, %s13
          %p182 = scmp.lt.s32.totalorder %s181, 7
          %s183 = scalar_select %p182, %s181, 7
          %s184 = smul.addr %s183, 8
          %s185 = scalar_lea.vmem %s3, %s184
          %s186 = smul.u32 4, %s13
        $region32: #{sum_pool2d.1} parent=19 // pred_fallthru
          _
      $region20: #{sum_pool2d.1} parent=5 // pred_fallthru
        _
      %p187 = scmp.le.s32.totalorder 1, %s13
      %p188 = scmp.lt.s32.totalorder %s13, 3
      %p189 = pnand %p187, %p188
      %p190 = pneg %p189
      // Predicated region
      $region33: #{sum_pool2d.1} parent=5 // pred_check
        _
      $region34: #{sum_pool2d.1} parent=5 // pred_check_branch
        %192 = sbr.rel (%p189) target = $region36
      $region35: #{sum_pool2d.1} parent=5 // pred_region
        %s193 = ssub.s32 %s13, 1
        %s194 = smul.u32 4, %s18
        %p195 = scmp.lt.s32.totalorder %s194, 7
        %s196 = scalar_select %p195, %s194, 7
        %s197 = smul.addr %s196, 8
        %s198 = scalar_lea.vmem %s0, %s197
        %p199 = pneg %p39
        %p200 = pneg %p36
        %p201 = pneg %p60
        %p202 = pneg %p57
        %s203 = smul.u32 4, %s18
        %p204 = scmp.lt.s32.totalorder %s203, 7
        %s205 = scalar_select %p204, %s203, 7
        %s206 = smul.addr %s205, 8
        %s207 = scalar_lea.vmem %s2, %s206
        %p208 = pneg %p86
        %p209 = pneg %p83
        %s210 = smul.u32 4, %s18
        %p211 = scmp.lt.s32.totalorder %s210, 7
        %s212 = scalar_select %p211, %s210, 7
        %s213 = smul.addr %s212, 8
        %s214 = scalar_lea.vmem %s3, %s213
        %p215 = pneg %p112
        %p216 = pneg %p109
        %p217 = pneg %p138
        %p218 = pneg %p135
        %s219 = sand.u32 %s125, 1
        %s220 = scalar_lea.sflag [#allocation3], %s219
        %s221 = sand.u32 %s125, 1
        %s222 = smul.addr %s221, 32
        %s223 = scalar_lea.vmem [#allocation2], %s222
        %s224 = smul.u32 4, %s18
        %p225 = scmp.lt.s32.totalorder %s224, 7
        %s226 = scalar_select %p225, %s224, 7
        %s227 = smul.addr %s226, 8
        %s228 = scalar_lea.vmem %s0, %s227
        %s229 = smul.u32 4, %s18
        %s230 = smul.u32 4, %s18
        %p231 = scmp.lt.s32.totalorder %s230, 7
        %s232 = scalar_select %p231, %s230, 7
        %s233 = smul.addr %s232, 8
        %s234 = scalar_lea.vmem %s2, %s233
        %s235 = smul.u32 4, %s18
        %s236 = smul.u32 4, %s18
        %p237 = scmp.lt.s32.totalorder %s236, 7
        %s238 = scalar_select %p237, %s236, 7
        %s239 = smul.addr %s238, 8
        %s240 = scalar_lea.vmem %s3, %s239
        %s241 = smul.u32 4, %s18
        %s242 = smul.u32 4, %s18
        %v243 = vld [vmem:[%s228] sm:$0xff]
        %v244 = vld [vmem:[%s228 + $0x8] sm:$0xff]
        %v245 = vld [vmem:[%s228 + $0x10] sm:$0xff]
        %v246 = vld [vmem:[%s228 + $0x18] sm:$0xff]
        %v247 = vld [vmem:[%s1] sm:$0xff]
        %v248 = vld [vmem:[%s1 + $0x8] sm:$0xff]
        %v249 = vld [vmem:[%s1 + $0x10] sm:$0xff]
        %v250 = vld [vmem:[%s1 + $0x18] sm:$0xff]
        %vm251 = vcmask 261120
        %v253 = vsel %vm251, %v243, 0
        %v256 = vsel %vm251, %v244, 0
        %v259 = vsel %vm251, %v245, 0
        %v262 = vsel %vm251, %v246, 0
        %264 = vmatprep.subr.mxu0 0.0
        %265 = vmatpush1.msra.mxu0 %v247
        %266 = vmatprep.subr.mxu0 0.0
        %267 = vmatpush1.msra.mxu0 %v248
        %268 = vmatprep.subr.mxu0 0.0
        %269 = vmatpush1.msra.mxu0 %v249
        %270 = vmatprep.subr.mxu0 0.0
        %271 = vmatpush1.msra.mxu0 %v250
        %272 = vmatprep.subr.mxu0 0.0
        %273 = vmatpush1.msra.mxu0 0.0
        %274 = vmatprep.subr.mxu0 0.0
        %275 = vmatpush1.msra.mxu0 0.0
        %276 = vmatprep.subr.mxu0 0.0
        %277 = vmatpush1.msra.mxu0 0.0
        %278 = vmatprep.subr.mxu0 0.0
        %279 = vmatpush1.msra.mxu0 0.0
        %280 = vmatprep.subr.mxu0 0.0
        %281 = vmatpush1.msra.mxu0 0.0
        %282 = vmatprep.subr.mxu0 0.0
        %283 = vmatpush1.msra.mxu0 0.0
        %284 = vmatprep.subr.mxu0 0.0
        %285 = vmatpush1.msra.mxu0 0.0
        %286 = vmatprep.subr.mxu0 0.0
        %287 = vmatpush1.msra.mxu0 0.0
        %288 = vmatprep.subr.mxu0 0.0
        %289 = vmatpush1.msra.mxu0 0.0
        %290 = vmatprep.subr.mxu0 0.0
        %291 = vmatpush1.msra.mxu0 0.0
        %292 = vmatprep.subr.mxu0 0.0
        %293 = vmatpush1.msra.mxu0 0.0
        %294 = vmatprep.subr.mxu0 0.0
        %295 = vmatpush1.msra.mxu0 0.0
        %296 = vmatprep.subr.mxu0 0.0
        %297 = vmatpush1.msra.mxu0 0.0
        %298 = vmatprep.subr.mxu0 0.0
        %299 = vmatpush1.msra.mxu0 0.0
        %300 = vmatprep.subr.mxu0 0.0
        %301 = vmatpush1.msra.mxu0 0.0
        %302 = vmatprep.subr.mxu0 0.0
        %303 = vmatpush1.msra.mxu0 0.0
        %304 = vmatprep.subr.mxu0 0.0
        %305 = vmatpush1.msra.mxu0 0.0
        %306 = vmatprep.subr.mxu0 0.0
        %307 = vmatpush1.msra.mxu0 0.0
        %308 = vmatprep.subr.mxu0 0.0
        %309 = vmatpush1.msra.mxu0 0.0
        %310 = vmatprep.subr.mxu0 0.0
        %311 = vmatpush1.msra.mxu0 0.0
        %312 = vmatprep.subr.mxu0 0.0
        %313 = vmatpush1.msra.mxu0 0.0
        %314 = vmatprep.subr.mxu0 0.0
        %315 = vmatpush1.msra.mxu0 0.0
        %316 = vmatprep.subr.mxu0 0.0
        %317 = vmatpush1.msra.mxu0 0.0
        %318 = vmatprep.subr.mxu0 0.0
        %319 = vmatpush1.msra.mxu0 0.0
        %320 = vmatprep.subr.mxu0 0.0
        %321 = vmatpush1.msra.mxu0 0.0
        %322 = vmatprep.subr.mxu0 0.0
        %323 = vmatpush1.msra.mxu0 0.0
        %324 = vmatprep.subr.mxu0 0.0
        %325 = vmatpush1.msra.mxu0 0.0
        %326 = vmatprep.subr.mxu0 0.0
        %327 = vmatpush1.msra.mxu0 0.0
        %328 = vmatprep.mubr.f32.mxu0 0.0
        %329 = vmatmul.mubr.f32.gmra.mrb[0].mxu0 %v253
        %v330 = vpop.f32.mrb[0].mxu0
        %v331 = vadd.f32 0.0, %v330
        %v332 = vpop.f32.mrb[0].mxu0
        %333 = vmatprep.mubr.f32.mxu0 0.0
        %334 = vmatmul.mubr.f32.gmra.mrb[0].mxu0 %v256
        %v335 = vpop.f32.mrb[0].mxu0
        %v336 = vadd.f32 0.0, %v335
        %v337 = vpop.f32.mrb[0].mxu0
        %338 = vmatprep.mubr.f32.mxu0 0.0
        %339 = vmatmul.mubr.f32.gmra.mrb[0].mxu0 %v259
        %v340 = vpop.f32.mrb[0].mxu0
        %v341 = vadd.f32 0.0, %v340
        %v342 = vpop.f32.mrb[0].mxu0
        %343 = vmatprep.mubr.f32.mxu0 0.0
        %344 = vmatmul.mubr.f32.gmra.mrb[0].mxu0 %v262
        %v345 = vpop.f32.mrb[0].mxu0
        %v346 = vadd.f32 0.0, %v345
        %v347 = vpop.f32.mrb[0].mxu0
        %348 = vdwg.mxu0
        %v349 = vld [vmem:[%s234] sm:$0xff]
        %v350 = vld [vmem:[%s234 + $0x8] sm:$0xff]
        %v351 = vld [vmem:[%s234 + $0x10] sm:$0xff]
        %v352 = vld [vmem:[%s234 + $0x18] sm:$0xff]
        %354 = vset.pattern.permute.xlu0 0
        %355 = vperm.xlu0 %354, %v349
        %v356 = vpop.permute.xlu0 %355
        %359 = vset.pattern.permute.xlu0 0
        %360 = vperm.xlu0 %359, %v350
        %v361 = vpop.permute.xlu0 %360
        %364 = vset.pattern.permute.xlu0 0
        %365 = vperm.xlu0 %364, %v351
        %v366 = vpop.permute.xlu0 %365
        %369 = vset.pattern.permute.xlu0 0
        %370 = vperm.xlu0 %369, %v352
        %v371 = vpop.permute.xlu0 %370
        %v373 = vmul.f32 %v331, %v356
        %v374 = vmul.f32 %v336, %v361
        %v375 = vmul.f32 %v341, %v366
        %v376 = vmul.f32 %v346, %v371
        %v377 = vld [vmem:[%s240] sm:$0xff]
        %v378 = vld [vmem:[%s240 + $0x8] sm:$0xff]
        %v379 = vld [vmem:[%s240 + $0x10] sm:$0xff]
        %v380 = vld [vmem:[%s240 + $0x18] sm:$0xff]
        %382 = vset.pattern.permute.xlu0 0
        %383 = vperm.xlu0 %382, %v377
        %v384 = vpop.permute.xlu0 %383
        %387 = vset.pattern.permute.xlu0 0
        %388 = vperm.xlu0 %387, %v378
        %v389 = vpop.permute.xlu0 %388
        %392 = vset.pattern.permute.xlu0 0
        %393 = vperm.xlu0 %392, %v379
        %v394 = vpop.permute.xlu0 %393
        %397 = vset.pattern.permute.xlu0 0
        %398 = vperm.xlu0 %397, %v380
        %v399 = vpop.permute.xlu0 %398
        %v401 = vadd.f32 %v373, %v384
        %v402 = vadd.f32 %v374, %v389
        %v403 = vadd.f32 %v375, %v394
        %v404 = vadd.f32 %v376, %v399
        %vm405 = vcmask 64512
        %406 = vst.msk [vmem:[%s223] sm:$0xff] %vm405, %v401
        %407 = vst.msk [vmem:[%s223 + $0x8] sm:$0xff] %vm405, %v402
        %408 = vst.msk [vmem:[%s223 + $0x10] sm:$0xff] %vm405, %v403
        %409 = vst.msk [vmem:[%s223 + $0x18] sm:$0xff] %vm405, %v404
        %s410 = sand.u32 %s125, 1
        %s411 = scalar_lea.sflag [#allocation3], %s410
        %s412 = sand.u32 %s125, 1
        %s413 = smul.addr %s412, 32
        %s414 = scalar_lea.vmem [#allocation2], %s413
        // Predicated region
        $region37: #{sum_pool2d.1} parent=35 // pred_check
          %p415 = pneg %p135
        $region38: #{sum_pool2d.1} parent=35 // pred_check_branch
          %417 = sbr.rel (%p415) target = $region40
        $region39: #{sum_pool2d.1} parent=35 // pred_region
          %s418 = smul.u32 4, %s18
          %s420 = ssub.s32 512, 512
          %421 = vsyncadd %s411, %s420
          %s422 = smul.addr %s418, 128
          %s423 = scalar_lea.hbm %s4, %s422
          %s424 = sshll.u32 %s414, 4
          %s425 = int_to_ptr.vmem [resolvable:$true] %s424
          %430 = dma.vmem_to_hbm [thread:$0]  %s425, 512, %s423, %s411, 128, 128, 8
        $region40: #{sum_pool2d.1} parent=35 // pred_fallthru
          _
      $region36: #{sum_pool2d.1} parent=5 // pred_fallthru
        _
      %p431 = scmp.le.s32.totalorder 2, %s13
      // Predicated region
      $region41: #{sum_pool2d.1} parent=5 // pred_check
        %p432 = pneg %p431
      $region42: #{sum_pool2d.1} parent=5 // pred_check_branch
        %434 = sbr.rel (%p432) target = $region44
      $region43: #{sum_pool2d.1} parent=5 // pred_region
        %s435 = ssub.s32 %s13, 2
        // Predicated region
        $region45: #{sum_pool2d.1} parent=43 // pred_check
          %p436 = pneg %p141
        $region46: #{sum_pool2d.1} parent=43 // pred_check_branch
          %438 = sbr.rel (%p436) target = $region48
        $region47: #{sum_pool2d.1} parent=43 // pred_region
          %s439 = sand.u32 %s126, 1
          %s440 = scalar_lea.sflag [#allocation3], %s439
          %s441 = sand.u32 %s126, 1
          %s442 = smul.addr %s441, 32
          %s443 = scalar_lea.vmem [#allocation2], %s442
          %444 = dma.done %s440, 512
        $region48: #{sum_pool2d.1} parent=43 // pred_fallthru
          _
      $region44: #{sum_pool2d.1} parent=5 // pred_fallthru
        _
    $region6: #{sum_pool2d.1} parent=1 // loop_footer
      %s17 = sadd.s32 1, %s13
    $region7: #{sum_pool2d.1} parent=1 // loop_footer_branch
      %12 = sbr.rel target = $region3
    $region8: #{sum_pool2d.1} parent=1 // loop_exit
      _
    %445 = vsyncpa [#allocation3], 1
    %s446 = scalar_lea.sflag [#allocation3], 1
    %447 = vsyncpa %s446, 1

</llo_original>
